<compile_context>
chip_gen: v7x
topology: tpu7x:2x2x1
jax: 0.10.0
libtpu: 0.0.40
codegen_flags: <defaults>
</compile_context>

<pallas_src>
import math
import functools

import jax
import jax.numpy as jnp
from jax import lax
from jax.experimental import pallas as pl
from jax.experimental.pallas import tpu as pltpu


# ---------------------------------------------------------------------------
# Kernel: y = dropout(x + pe_rows)   (inverted dropout only when training)
# ---------------------------------------------------------------------------
def _pe_add_dropout_kernel(seed_ref, x_ref, pe_ref, o_ref, *,
                           p, training, block_s, batch, d_model):
    x = x_ref[...]                       # (TS, B, D)
    pe = pe_ref[...]                     # (TS, 1, D) -> broadcasts over batch
    y = x + pe.astype(x.dtype)

    if training and p > 0.0:
        shape = y.shape
        # Global element counter (unique per element across the whole array),
        # built from int32 iotas then hashed in uint32.
        row0 = pl.program_id(0) * block_s
        s_idx = lax.broadcasted_iota(jnp.int32, shape, 0) + row0
        b_idx = lax.broadcasted_iota(jnp.int32, shape, 1)
        d_idx = lax.broadcasted_iota(jnp.int32, shape, 2)

        s_u = s_idx.astype(jnp.uint32)
        b_u = b_idx.astype(jnp.uint32)
        d_u = d_idx.astype(jnp.uint32)
        ctr = (s_u * jnp.uint32(batch) + b_u) * jnp.uint32(d_model) + d_u

        seed = seed_ref[0].astype(jnp.uint32)
        h = ctr + seed * jnp.uint32(0x9E3779B9)
        # murmur3 fmix32 finalizer -> well-mixed 32 random bits per element.
        h = h ^ (h >> 16)
        h = h * jnp.uint32(0x85EBCA6B)
        h = h ^ (h >> 13)
        h = h * jnp.uint32(0xC2B2AE35)
        h = h ^ (h >> 16)

        # keep iff h >= p * 2^32  (integer compare, no int->float convert)
        threshold = jnp.uint32(min(int(round(p * (1 << 32))), (1 << 32) - 1))
        keep = h >= threshold
        scale = jnp.asarray(1.0 / (1.0 - p), dtype=y.dtype)
        y = jnp.where(keep, y * scale, jnp.zeros_like(y))

    o_ref[...] = y.astype(o_ref.dtype)


# ---------------------------------------------------------------------------
# PE buffer construction (same as the module's __init__), plain JAX.
# ---------------------------------------------------------------------------
def make_pe_table(d_model: int, max_len: int, dtype=jnp.float32):
    position = jnp.arange(max_len, dtype=jnp.float32)[:, None]           # (L, 1)
    div_term = jnp.exp(
        jnp.arange(0, d_model, 2, dtype=jnp.float32)
        * (-math.log(10000.0) / d_model)
    )                                                                     # (D/2,)
    angles = position * div_term                                          # (L, D/2)
    pe = jnp.zeros((max_len, 1, d_model), dtype=jnp.float32)
    pe = pe.at[:, 0, 0::2].set(jnp.sin(angles))
    pe = pe.at[:, 0, 1::2].set(jnp.cos(angles))
    return pe.astype(dtype)


def _auto_block_s(S, B, D, itemsize, budget_bytes=6 * 1024 * 1024):
    """Largest seq-tile whose double-buffered in/out/pe tiles fit the budget."""
    per_row = (2 * B + 1) * D * itemsize * 2      # x-in + out + pe, x2 buffers
    ts = max(1, budget_bytes // max(1, per_row))
    ts = max(8, (ts // 8) * 8)
    return int(min(S, ts))


# ---------------------------------------------------------------------------
# Wrapper
# ---------------------------------------------------------------------------
def positional_encoding(x, pe, *, p=0.1, training=False, seed=0,
                        block_s=None, vmem_limit_bytes=32 * 1024 * 1024):
    """x: (S, B, D); pe: (max_len, 1, D) sinusoidal table (max_len >= S)."""
    S, B, D = x.shape
    max_len = pe.shape[0]
    assert pe.shape == (max_len, 1, D) and max_len >= S

    pe = pe.astype(x.dtype)                      # halve PE HBM read for bf16 x
    itemsize = jnp.dtype(x.dtype).itemsize
    if block_s is None:
        block_s = _auto_block_s(S, B, D, itemsize)
    block_s = int(min(block_s, S))
    grid = (pl.cdiv(S, block_s),)

    seed_arr = jnp.asarray([seed], dtype=jnp.int32)

    kernel = functools.partial(
        _pe_add_dropout_kernel,
        p=float(p), training=bool(training),
        block_s=block_s, batch=int(B), d_model=int(D))

    cost = pl.CostEstimate(
        flops=S * B * D,
        transcendentals=0,
        bytes_accessed=2 * S * B * D * itemsize + S * D * itemsize)

    # TODO(synk): for B < 8 a (B*S, D)-style re-layout would avoid sublane
    # padding, but the wrapper transpose costs an extra HBM round-trip, so we
    # keep the module's native (S, B, D) layout here.
    return pl.pallas_call(
        kernel,
        out_shape=jax.ShapeDtypeStruct((S, B, D), x.dtype),
        grid_spec=pltpu.PrefetchScalarGridSpec(
            num_scalar_prefetch=1,               # seed -> SMEM
            grid=grid,
            in_specs=[
                pl.BlockSpec((block_s, B, D), lambda i, seed: (i, 0, 0)),
                # full (unsliced) PE table; index_map selects the [:S] window
                pl.BlockSpec((block_s, 1, D), lambda i, seed: (i, 0, 0)),
            ],
            out_specs=pl.BlockSpec((block_s, B, D), lambda i, seed: (i, 0, 0)),
        ),
        compiler_params=pltpu.CompilerParams(
            dimension_semantics=("parallel",),
            vmem_limit_bytes=vmem_limit_bytes),
        cost_estimate=cost,
    )(seed_arr, x, pe)


if __name__ == "__main__":
    # Small shapes consistent with the module: [seq, batch, d_model].
    S, B, D = 64, 8, 128          # D lane-dense (128), B fills sublanes (8)
    MAX_LEN = 256
    P_DROP = 0.1

    key = jax.random.PRNGKey(0)
    x = jax.random.normal(key, (S, B, D), dtype=jnp.float32)
    pe = make_pe_table(D, MAX_LEN, dtype=jnp.float32)
    ref = x + pe[:S]

    # Eval mode (dropout is identity) -> exact check against reference.
    y_eval = jax.block_until_ready(
        positional_encoding(x, pe, p=P_DROP, training=False, block_s=16))
    assert y_eval.shape == (S, B, D)
    assert jnp.allclose(y_eval, ref, atol=1e-6, rtol=1e-6), "eval-mode mismatch"

    # Train mode (stochastic inverted dropout). Kept elements must equal
    # ref / (1 - p); dropped elements are exactly zero.
    y_train = jax.block_until_ready(
        positional_encoding(x, pe, p=P_DROP, training=True, seed=123,
                            block_s=16))
    assert y_train.shape == (S, B, D)
    scale = 1.0 / (1.0 - P_DROP)
    kept = y_train != 0
    assert jnp.allclose(jnp.where(kept, y_train, 0.0),
                        jnp.where(kept, ref * scale, 0.0),
                        atol=1e-5, rtol=1e-5), "train-mode value mismatch"
    drop_frac = 1.0 - float(jnp.mean(kept.astype(jnp.float32)))
    assert 0.02 < drop_frac < 0.25, f"implausible drop fraction {drop_frac}"

    print("KERNEL_OK")
</pallas_src>

<mosaic_0001>
module attributes {stable_mosaic.version = 11 : i64} {
  func.func @_pe_add_dropout_kernel(%arg0: i32, %arg1: memref<1xi32, #tpu.memory_space<smem>>, %arg2: memref<16x8x128xf32, #tpu.memory_space<vmem>>, %arg3: memref<16x1x128xf32, #tpu.memory_space<vmem>>, %arg4: memref<16x8x128xf32, #tpu.memory_space<vmem>>) attributes {dimension_semantics = [#tpu.dimension_semantics<parallel>], iteration_bounds = array<i64: 4>, scalar_prefetch = 1 : i64, scratch_operands = 0 : i64, tpu.core_type = #tpu.core_type<tc>, window_params = [{transform_indices = @transform_0, window_bounds = array<i64: 16, 8, 128>}, {transform_indices = @transform_1, window_bounds = array<i64: 16, 1, 128>}, {transform_indices = @transform_2, window_bounds = array<i64: 16, 8, 128>}]} {
    %c0 = arith.constant 0 : index
    %c0_0 = arith.constant 0 : index
    %c0_1 = arith.constant 0 : index
    %0 = vector.load %arg2[%c0, %c0_0, %c0_1] : memref<16x8x128xf32, #tpu.memory_space<vmem>>, vector<16x8x128xf32>
    %c0_2 = arith.constant 0 : index
    %c0_3 = arith.constant 0 : index
    %c0_4 = arith.constant 0 : index
    %1 = vector.load %arg3[%c0_2, %c0_3, %c0_4] : memref<16x1x128xf32, #tpu.memory_space<vmem>>, vector<16x1x128xf32>
    %2 = vector.broadcast %1 : vector<16x1x128xf32> to vector<16x8x128xf32>
    %3 = arith.addf %0, %2 : vector<16x8x128xf32>
    %c0_5 = arith.constant 0 : index
    %c0_6 = arith.constant 0 : index
    %c0_7 = arith.constant 0 : index
    %4 = vector.load %arg4[%c0_5, %c0_6, %c0_7] : memref<16x8x128xf32, #tpu.memory_space<vmem>>, vector<16x8x128xf32>
    tpu.vector_store %arg4[%c0_5, %c0_6, %c0_7], %3 {strides = array<i32>} : memref<16x8x128xf32, #tpu.memory_space<vmem>>, vector<16x8x128xf32>,
    return
  }
  func.func @transform_0(%arg0: i32, %arg1: memref<1xi32, #tpu.memory_space<smem>>) -> (i32, i32, i32) {
    %c0_i32 = arith.constant 0 : i32
    %c0_i32_0 = arith.constant 0 : i32
    %c0_i32_1 = arith.constant 0 : i32
    return %arg0, %c0_i32, %c0_i32_0 : i32, i32, i32
  }
  func.func @transform_1(%arg0: i32, %arg1: memref<1xi32, #tpu.memory_space<smem>>) -> (i32, i32, i32) {
    %c0_i32 = arith.constant 0 : i32
    %c0_i32_0 = arith.constant 0 : i32
    %c0_i32_1 = arith.constant 0 : i32
    return %arg0, %c0_i32, %c0_i32_0 : i32, i32, i32
  }
  func.func @transform_2(%arg0: i32, %arg1: memref<1xi32, #tpu.memory_space<smem>>) -> (i32, i32, i32) {
    %c0_i32 = arith.constant 0 : i32
    %c0_i32_0 = arith.constant 0 : i32
    %c0_i32_1 = arith.constant 0 : i32
    return %arg0, %c0_i32, %c0_i32_0 : i32, i32, i32
  }
}

</mosaic_0001>

<llo_original>
// kernel: tpu_custom_call.1
$region0: #{tpu_custom_call.1}
  #allocation0 [shape = 'u32[]', space=smem, size = 0x4, offset = 0x4, fixed_abs, tag = 'smem constant byte address 0x4 - core index']
  #allocation1 [shape = 'u32[144,128]{1,0:T(1,128)}', space=vmem, size = 0x12000, scoped, tag = 'internal scratch']
  #allocation2 [shape = 's32[1]{0}', space=sflag, size = 0x4, scoped, tag = 'scoped memory for tpu_custom_call.1']
  #allocation3 [shape = 's32[1]{0:T(128)S(6)}', space=smem, size = 0x200, scoped, tag = 'prefetched SMEM operand 0']
  %s0 = inlined_call_operand.<no memory space> [shape: s32[1], index: 0, kind: input, shape index: {}]
  %s1 = inlined_call_operand.hbm [shape: f32[64,8,128], index: 1, kind: input, shape index: {}]
  %s2 = inlined_call_operand.hbm [shape: f32[256,1,128], index: 2, kind: input, shape index: {}]
  %s3 = inlined_call_operand.hbm [shape: f32[64,8,128], index: 3, kind: output, shape index: {}]
  %s4 = sld [smem:[#allocation0]]
  $region49: #{tpu_custom_call.1} parent=0
    _
  %s6 = ssub.s32 1, %s4
  %s7 = scalar_select 0, %s6, %s4
  %8 = sst [smem:[#allocation3]] %s0
  $region1: #{tpu_custom_call.1} parent=0
    #allocation4 [shape = 'u8[131072]{0}', space=vmem, size = 0x20000, scoped, tag = 'input window, operand 1']
    #allocation5 [shape = 's32[2]{0}', space=sflag, size = 0x8, scoped, tag = 'scoped memory for tpu_custom_call.1']
    #allocation6 [shape = 's32[2]{0}', space=sflag, size = 0x8, scoped, tag = 'scoped memory for tpu_custom_call.1']
    #allocation7 [shape = 'u8[16384]{0}', space=vmem, size = 0x4000, scoped, tag = 'input window, operand 2']
    #allocation8 [shape = 's32[2]{0}', space=sflag, size = 0x8, scoped, tag = 'scoped memory for tpu_custom_call.1']
    #allocation9 [shape = 'u8[131072]{0}', space=vmem, size = 0x20000, scoped, tag = 'output window, operand 0']
    %9 = vsyncpa [#allocation5], 0
    %s10 = scalar_lea.sflag [#allocation5], 1
    %11 = vsyncpa %s10, 0
    %12 = vsyncpa [#allocation8], 0
    %s13 = scalar_lea.sflag [#allocation8], 1
    %14 = vsyncpa %s13, 0
    %15 = vsyncpa [#allocation6], 0
    %s16 = scalar_lea.sflag [#allocation6], 1
    %17 = vsyncpa %s16, 0
    loop: start=0, step=1, limit=6
    $region2: #{tpu_custom_call.1} parent=1 // loop_pre_header
      _
    $region3: #{tpu_custom_call.1} parent=1 // loop_header
      %s19 = sphi 0, %s23
      %p20 = scmp.ge.s32.totalorder %s19, 6
      %s29 = sphi 0, %s31
      %s32 = sphi 0, %s29
      %s33 = sphi 0, %s32
      %s49 = sphi 0, %s33
      %s55 = sphi 0, %s57
      %s58 = sphi 0, %s55
      %s59 = sphi 0, %s58
      %s75 = sphi 0, %s59
      %s81 = sphi 0, %s83
      %s84 = sphi 0, %s81
      %s85 = sphi 0, %s84
      %s101 = sphi 0, %s85
    $region4: #{tpu_custom_call.1} parent=1 // loop_header_branch
      %22 = sbr.rel (%p20) target = $region8
    $region5: #{tpu_custom_call.1} parent=1 // loop_body
      %s24 = ssub.s32 %s19, 1
      %s25 = ssub.s32 %s19, 2
      %s26 = sadd.s32 %s19, 1
      %s27 = ssub.s32 %s19, %s26
      %p28 = scmp.eq.s32.totalorder %s27, 0
      %s30 = sadd.s32 %s29, 1
      %s31 = scalar_select %p28, %s29, %s30
      %p34 = pneg %p28
      %p35 = scmp.eq.s32.totalorder %s19, 3
      %p36 = por %p34, %p35
      %p37 = scmp.ne.s32.totalorder %s29, %s32
      %p38 = scmp.eq.s32.totalorder %s19, 0
      %p39 = por %p37, %p38
      %p40 = scmp.ne.s32.totalorder %s29, %s32
      %p41 = scmp.eq.s32.totalorder %s24, 3
      %p42 = por %p40, %p41
      %p43 = scmp.ne.s32.totalorder %s32, %s33
      %p44 = scmp.eq.s32.totalorder %s24, 0
      %p45 = por %p43, %p44
      %p46 = scmp.ne.s32.totalorder %s32, %s33
      %p47 = scmp.eq.s32.totalorder %s25, 3
      %p48 = por %p46, %p47
      %p50 = scmp.ne.s32.totalorder %s33, %s49
      %p51 = scmp.eq.s32.totalorder %s25, 0
      %p52 = por %p50, %p51
      %s53 = ssub.s32 %s19, %s26
      %p54 = scmp.eq.s32.totalorder %s53, 0
      %s56 = sadd.s32 %s55, 1
      %s57 = scalar_select %p54, %s55, %s56
      %p60 = pneg %p54
      %p61 = scmp.eq.s32.totalorder %s19, 3
      %p62 = por %p60, %p61
      %p63 = scmp.ne.s32.totalorder %s55, %s58
      %p64 = scmp.eq.s32.totalorder %s19, 0
      %p65 = por %p63, %p64
      %p66 = scmp.ne.s32.totalorder %s55, %s58
      %p67 = scmp.eq.s32.totalorder %s24, 3
      %p68 = por %p66, %p67
      %p69 = scmp.ne.s32.totalorder %s58, %s59
      %p70 = scmp.eq.s32.totalorder %s24, 0
      %p71 = por %p69, %p70
      %p72 = scmp.ne.s32.totalorder %s58, %s59
      %p73 = scmp.eq.s32.totalorder %s25, 3
      %p74 = por %p72, %p73
      %p76 = scmp.ne.s32.totalorder %s59, %s75
      %p77 = scmp.eq.s32.totalorder %s25, 0
      %p78 = por %p76, %p77
      %s79 = ssub.s32 %s19, %s26
      %p80 = scmp.eq.s32.totalorder %s79, 0
      %s82 = sadd.s32 %s81, 1
      %s83 = scalar_select %p80, %s81, %s82
      %p86 = pneg %p80
      %p87 = scmp.eq.s32.totalorder %s19, 3
      %p88 = por %p86, %p87
      %p89 = scmp.ne.s32.totalorder %s81, %s84
      %p90 = scmp.eq.s32.totalorder %s19, 0
      %p91 = por %p89, %p90
      %p92 = scmp.ne.s32.totalorder %s81, %s84
      %p93 = scmp.eq.s32.totalorder %s24, 3
      %p94 = por %p92, %p93
      %p95 = scmp.ne.s32.totalorder %s84, %s85
      %p96 = scmp.eq.s32.totalorder %s24, 0
      %p97 = por %p95, %p96
      %p98 = scmp.ne.s32.totalorder %s84, %s85
      %p99 = scmp.eq.s32.totalorder %s25, 3
      %p100 = por %p98, %p99
      %p102 = scmp.ne.s32.totalorder %s85, %s101
      %p103 = scmp.eq.s32.totalorder %s25, 0
      %p104 = por %p102, %p103
      %p105 = scmp.le.s32.totalorder 1, %s19
      %p106 = scmp.lt.s32.totalorder %s19, 5
      %p107 = pnand %p105, %p106
      %p108 = pneg %p107
      // Predicated region
      $region9: #{tpu_custom_call.1} parent=5 // pred_check
        _
      $region10: #{tpu_custom_call.1} parent=5 // pred_check_branch
        %110 = sbr.rel (%p107) target = $region12
      $region11: #{tpu_custom_call.1} parent=5 // pred_region
        %s111 = ssub.s32 %s19, 1
      $region12: #{tpu_custom_call.1} parent=5 // pred_fallthru
        _
      %p112 = scmp.lt.s32.totalorder %s19, 4
      // Predicated region
      $region13: #{tpu_custom_call.1} parent=5 // pred_check
        %p113 = pneg %p112
      $region14: #{tpu_custom_call.1} parent=5 // pred_check_branch
        %115 = sbr.rel (%p113) target = $region16
      $region15: #{tpu_custom_call.1} parent=5 // pred_region
        // Predicated region
        $region17: #{tpu_custom_call.1} parent=15 // pred_check
          %p116 = pneg %p39
        $region18: #{tpu_custom_call.1} parent=15 // pred_check_branch
          %118 = sbr.rel (%p116) target = $region20
        $region19: #{tpu_custom_call.1} parent=15 // pred_region
          %s119 = sand.u32 %s29, 1
          %s120 = scalar_lea.sflag [#allocation5], %s119
          %s121 = sand.u32 %s29, 1
          %s122 = smul.addr %s121, 128
          %s123 = scalar_lea.vmem [#allocation4], %s122
          %s124 = smul.u32 16, %s19
          %s126 = ssub.s32 2048, 2048
          %127 = vsyncadd %s120, %s126
          %s128 = smul.addr %s124, 128
          %s129 = scalar_lea.hbm %s1, %s128
          %s130 = sshll.u32 %s123, 4
          %s131 = int_to_ptr.vmem [resolvable:$true] %s130
          %136 = dma.hbm_to_vmem [thread:$0]  %s129, 2048, %s131, %s120, 128, 128, 8
        $region20: #{tpu_custom_call.1} parent=15 // pred_fallthru
          _
        // Predicated region
        $region21: #{tpu_custom_call.1} parent=15 // pred_check
          %p137 = pneg %p65
        $region22: #{tpu_custom_call.1} parent=15 // pred_check_branch
          %139 = sbr.rel (%p137) target = $region24
        $region23: #{tpu_custom_call.1} parent=15 // pred_region
          %s140 = sand.u32 %s55, 1
          %s141 = scalar_lea.sflag [#allocation8], %s140
          %s142 = sand.u32 %s55, 1
          %s143 = smul.addr %s142, 16
          %s144 = scalar_lea.vmem [#allocation7], %s143
          %s145 = smul.u32 16, %s19
          %s147 = ssub.s32 256, 256
          %148 = vsyncadd %s141, %s147
          %s149 = smul.addr %s145, 16
          %s150 = scalar_lea.hbm %s2, %s149
          %s151 = sshll.u32 %s144, 4
          %s152 = int_to_ptr.vmem [resolvable:$true] %s151
          %157 = dma.hbm_to_vmem [thread:$0]  %s150, 256, %s152, %s141, 16, 16, 1
        $region24: #{tpu_custom_call.1} parent=15 // pred_fallthru
          _
      $region16: #{tpu_custom_call.1} parent=5 // pred_fallthru
        _
      %p158 = scmp.le.s32.totalorder 1, %s19
      %p159 = scmp.lt.s32.totalorder %s19, 5
      %p160 = pnand %p158, %p159
      %p161 = pneg %p160
      // Predicated region
      $region25: #{tpu_custom_call.1} parent=5 // pred_check
        _
      $region26: #{tpu_custom_call.1} parent=5 // pred_check_branch
        %163 = sbr.rel (%p160) target = $region28
      $region27: #{tpu_custom_call.1} parent=5 // pred_region
        %s164 = ssub.s32 %s19, 1
        %s165 = sand.u32 %s32, 1
        %s166 = scalar_lea.sflag [#allocation5], %s165
        %s167 = sand.u32 %s32, 1
        %s168 = smul.addr %s167, 128
        %s169 = scalar_lea.vmem [#allocation4], %s168
        // Predicated region
        $region29: #{tpu_custom_call.1} parent=27 // pred_check
          %p170 = pneg %p45
        $region30: #{tpu_custom_call.1} parent=27 // pred_check_branch
          %172 = sbr.rel (%p170) target = $region32
        $region31: #{tpu_custom_call.1} parent=27 // pred_region
          %173 = dma.done %s166, 2048
        $region32: #{tpu_custom_call.1} parent=27 // pred_fallthru
          _
        %s174 = sand.u32 %s58, 1
        %s175 = scalar_lea.sflag [#allocation8], %s174
        %s176 = sand.u32 %s58, 1
        %s177 = smul.addr %s176, 16
        %s178 = scalar_lea.vmem [#allocation7], %s177
        // Predicated region
        $region33: #{tpu_custom_call.1} parent=27 // pred_check
          %p179 = pneg %p71
        $region34: #{tpu_custom_call.1} parent=27 // pred_check_branch
          %181 = sbr.rel (%p179) target = $region36
        $region35: #{tpu_custom_call.1} parent=27 // pred_region
          %182 = dma.done %s175, 256
        $region36: #{tpu_custom_call.1} parent=27 // pred_fallthru
          _
        %s183 = sand.u32 %s32, 1
        %s184 = scalar_lea.sflag [#allocation5], %s183
        %s185 = sand.u32 %s32, 1
        %s186 = smul.addr %s185, 128
        %s187 = scalar_lea.vmem [#allocation4], %s186
        %p188 = pneg %p45
        %p189 = pneg %p42
        %s190 = sand.u32 %s58, 1
        %s191 = scalar_lea.sflag [#allocation8], %s190
        %s192 = sand.u32 %s58, 1
        %s193 = smul.addr %s192, 16
        %s194 = scalar_lea.vmem [#allocation7], %s193
        %p195 = pneg %p71
        %p196 = pneg %p68
        %p197 = pneg %p97
        %p198 = pneg %p94
        %s199 = sand.u32 %s84, 1
        %s200 = scalar_lea.sflag [#allocation6], %s199
        %s201 = sand.u32 %s84, 1
        %s202 = smul.addr %s201, 128
        %s203 = scalar_lea.vmem [#allocation9], %s202
        %s204 = smul.u32 16, %s24
        %s205 = smul.u32 16, %s24
        %s206 = smul.u32 16, %s24
        %v207 = vld [vmem:[%s169] sm:$0xff]
        %v208 = vld [vmem:[%s169 + $0x8] sm:$0xff]
        %v209 = vld [vmem:[%s169 + $0x10] sm:$0xff]
        %v210 = vld [vmem:[%s169 + $0x18] sm:$0xff]
        %v211 = vld [vmem:[%s169 + $0x20] sm:$0xff]
        %v212 = vld [vmem:[%s169 + $0x28] sm:$0xff]
        %v213 = vld [vmem:[%s169 + $0x30] sm:$0xff]
        %v214 = vld [vmem:[%s169 + $0x38] sm:$0xff]
        %v215 = vld [vmem:[%s169 + $0x40] sm:$0xff]
        %v216 = vld [vmem:[%s169 + $0x48] sm:$0xff]
        %v217 = vld [vmem:[%s169 + $0x50] sm:$0xff]
        %v218 = vld [vmem:[%s169 + $0x58] sm:$0xff]
        %v219 = vld [vmem:[%s169 + $0x60] sm:$0xff]
        %v220 = vld [vmem:[%s169 + $0x68] sm:$0xff]
        %v221 = vld [vmem:[%s169 + $0x70] sm:$0xff]
        %v222 = vld [vmem:[%s169 + $0x78] sm:$0xff]
        %v223 = vld [vmem:[%s178] sm:$0x1]
        %v224 = vld [vmem:[%s178 + $0x1] sm:$0x1]
        %v225 = vld [vmem:[%s178 + $0x2] sm:$0x1]
        %v226 = vld [vmem:[%s178 + $0x3] sm:$0x1]
        %v227 = vld [vmem:[%s178 + $0x4] sm:$0x1]
        %v228 = vld [vmem:[%s178 + $0x5] sm:$0x1]
        %v229 = vld [vmem:[%s178 + $0x6] sm:$0x1]
        %v230 = vld [vmem:[%s178 + $0x7] sm:$0x1]
        %v231 = vld [vmem:[%s178 + $0x8] sm:$0x1]
        %v232 = vld [vmem:[%s178 + $0x9] sm:$0x1]
        %v233 = vld [vmem:[%s178 + $0xa] sm:$0x1]
        %v234 = vld [vmem:[%s178 + $0xb] sm:$0x1]
        %v235 = vld [vmem:[%s178 + $0xc] sm:$0x1]
        %v236 = vld [vmem:[%s178 + $0xd] sm:$0x1]
        %v237 = vld [vmem:[%s178 + $0xe] sm:$0x1]
        %v238 = vld [vmem:[%s178 + $0xf] sm:$0x1]
        %v255 = vlaneseq
        %v256 = vshrl.u32 %v255, 7
        %v257 = vsub.s32 0, %v256
        %v258 = vrot.slane %v223, %v257
        %v259 = vlaneseq
        %v260 = vshrl.u32 %v259, 7
        %v261 = vsub.s32 0, %v260
        %v262 = vrot.slane %v224, %v261
        %v263 = vlaneseq
        %v264 = vshrl.u32 %v263, 7
        %v265 = vsub.s32 0, %v264
        %v266 = vrot.slane %v225, %v265
        %v267 = vlaneseq
        %v268 = vshrl.u32 %v267, 7
        %v269 = vsub.s32 0, %v268
        %v270 = vrot.slane %v226, %v269
        %v271 = vlaneseq
        %v272 = vshrl.u32 %v271, 7
        %v273 = vsub.s32 0, %v272
        %v274 = vrot.slane %v227, %v273
        %v275 = vlaneseq
        %v276 = vshrl.u32 %v275, 7
        %v277 = vsub.s32 0, %v276
        %v278 = vrot.slane %v228, %v277
        %v279 = vlaneseq
        %v280 = vshrl.u32 %v279, 7
        %v281 = vsub.s32 0, %v280
        %v282 = vrot.slane %v229, %v281
        %v283 = vlaneseq
        %v284 = vshrl.u32 %v283, 7
        %v285 = vsub.s32 0, %v284
        %v286 = vrot.slane %v230, %v285
        %v287 = vlaneseq
        %v288 = vshrl.u32 %v287, 7
        %v289 = vsub.s32 0, %v288
        %v290 = vrot.slane %v231, %v289
        %v291 = vlaneseq
        %v292 = vshrl.u32 %v291, 7
        %v293 = vsub.s32 0, %v292
        %v294 = vrot.slane %v232, %v293
        %v295 = vlaneseq
        %v296 = vshrl.u32 %v295, 7
        %v297 = vsub.s32 0, %v296
        %v298 = vrot.slane %v233, %v297
        %v299 = vlaneseq
        %v300 = vshrl.u32 %v299, 7
        %v301 = vsub.s32 0, %v300
        %v302 = vrot.slane %v234, %v301
        %v303 = vlaneseq
        %v304 = vshrl.u32 %v303, 7
        %v305 = vsub.s32 0, %v304
        %v306 = vrot.slane %v235, %v305
        %v307 = vlaneseq
        %v308 = vshrl.u32 %v307, 7
        %v309 = vsub.s32 0, %v308
        %v310 = vrot.slane %v236, %v309
        %v311 = vlaneseq
        %v312 = vshrl.u32 %v311, 7
        %v313 = vsub.s32 0, %v312
        %v314 = vrot.slane %v237, %v313
        %v315 = vlaneseq
        %v316 = vshrl.u32 %v315, 7
        %v317 = vsub.s32 0, %v316
        %v318 = vrot.slane %v238, %v317
        %v335 = vadd.f32 %v207, %v258
        %v336 = vadd.f32 %v208, %v262
        %v337 = vadd.f32 %v209, %v266
        %v338 = vadd.f32 %v210, %v270
        %v339 = vadd.f32 %v211, %v274
        %v340 = vadd.f32 %v212, %v278
        %v341 = vadd.f32 %v213, %v282
        %v342 = vadd.f32 %v214, %v286
        %v343 = vadd.f32 %v215, %v290
        %v344 = vadd.f32 %v216, %v294
        %v345 = vadd.f32 %v217, %v298
        %v346 = vadd.f32 %v218, %v302
        %v347 = vadd.f32 %v219, %v306
        %v348 = vadd.f32 %v220, %v310
        %v349 = vadd.f32 %v221, %v314
        %v350 = vadd.f32 %v222, %v318
        %351 = vst [vmem:[%s203] sm:$0xff] %v335
        %352 = vst [vmem:[%s203 + $0x8] sm:$0xff] %v336
        %353 = vst [vmem:[%s203 + $0x10] sm:$0xff] %v337
        %354 = vst [vmem:[%s203 + $0x18] sm:$0xff] %v338
        %355 = vst [vmem:[%s203 + $0x20] sm:$0xff] %v339
        %356 = vst [vmem:[%s203 + $0x28] sm:$0xff] %v340
        %357 = vst [vmem:[%s203 + $0x30] sm:$0xff] %v341
        %358 = vst [vmem:[%s203 + $0x38] sm:$0xff] %v342
        %359 = vst [vmem:[%s203 + $0x40] sm:$0xff] %v343
        %360 = vst [vmem:[%s203 + $0x48] sm:$0xff] %v344
        %361 = vst [vmem:[%s203 + $0x50] sm:$0xff] %v345
        %362 = vst [vmem:[%s203 + $0x58] sm:$0xff] %v346
        %363 = vst [vmem:[%s203 + $0x60] sm:$0xff] %v347
        %364 = vst [vmem:[%s203 + $0x68] sm:$0xff] %v348
        %365 = vst [vmem:[%s203 + $0x70] sm:$0xff] %v349
        %366 = vst [vmem:[%s203 + $0x78] sm:$0xff] %v350
        %s367 = sand.u32 %s84, 1
        %s368 = scalar_lea.sflag [#allocation6], %s367
        %s369 = sand.u32 %s84, 1
        %s370 = smul.addr %s369, 128
        %s371 = scalar_lea.vmem [#allocation9], %s370
        // Predicated region
        $region37: #{tpu_custom_call.1} parent=27 // pred_check
          %p372 = pneg %p94
        $region38: #{tpu_custom_call.1} parent=27 // pred_check_branch
          %374 = sbr.rel (%p372) target = $region40
        $region39: #{tpu_custom_call.1} parent=27 // pred_region
          %s375 = smul.u32 16, %s24
          %s377 = ssub.s32 2048, 2048
          %378 = vsyncadd %s368, %s377
          %s379 = smul.addr %s375, 128
          %s380 = scalar_lea.hbm %s3, %s379
          %s381 = sshll.u32 %s371, 4
          %s382 = int_to_ptr.vmem [resolvable:$true] %s381
          %387 = dma.vmem_to_hbm [thread:$0]  %s382, 2048, %s380, %s368, 128, 128, 8
        $region40: #{tpu_custom_call.1} parent=27 // pred_fallthru
          _
      $region28: #{tpu_custom_call.1} parent=5 // pred_fallthru
        _
      %p388 = scmp.le.s32.totalorder 2, %s19
      // Predicated region
      $region41: #{tpu_custom_call.1} parent=5 // pred_check
        %p389 = pneg %p388
      $region42: #{tpu_custom_call.1} parent=5 // pred_check_branch
        %391 = sbr.rel (%p389) target = $region44
      $region43: #{tpu_custom_call.1} parent=5 // pred_region
        %s392 = ssub.s32 %s19, 2
        // Predicated region
        $region45: #{tpu_custom_call.1} parent=43 // pred_check
          %p393 = pneg %p100
        $region46: #{tpu_custom_call.1} parent=43 // pred_check_branch
          %395 = sbr.rel (%p393) target = $region48
        $region47: #{tpu_custom_call.1} parent=43 // pred_region
          %s396 = sand.u32 %s85, 1
          %s397 = scalar_lea.sflag [#allocation6], %s396
          %s398 = sand.u32 %s85, 1
          %s399 = smul.addr %s398, 128
          %s400 = scalar_lea.vmem [#allocation9], %s399
          %401 = dma.done %s397, 2048
        $region48: #{tpu_custom_call.1} parent=43 // pred_fallthru
          _
      $region44: #{tpu_custom_call.1} parent=5 // pred_fallthru
        _
    $region6: #{tpu_custom_call.1} parent=1 // loop_footer
      %s23 = sadd.s32 1, %s19
    $region7: #{tpu_custom_call.1} parent=1 // loop_footer_branch
      %18 = sbr.rel target = $region3
    $region8: #{tpu_custom_call.1} parent=1 // loop_exit
      _
    %402 = vsyncpa [#allocation5], 1
    %s403 = scalar_lea.sflag [#allocation5], 1
    %404 = vsyncpa %s403, 1
    %405 = vsyncpa [#allocation8], 1
    %s406 = scalar_lea.sflag [#allocation8], 1
    %407 = vsyncpa %s406, 1
    %408 = vsyncpa [#allocation6], 1
    %s409 = scalar_lea.sflag [#allocation6], 1
    %410 = vsyncpa %s409, 1

</llo_original>
